<compile_context>
chip_gen: v7x
topology: tpu7x:2x2x1
jax: 0.10.0
libtpu: 0.0.40
codegen_flags: <defaults>
</compile_context>

<pallas_src>
from math import sqrt

import jax
import jax.numpy as jnp
from jax.experimental import pallas as pl
from jax.experimental.pallas import tpu as pltpu

EMB_DIM = 128
HEADS = 5
SCALE = 1.0 / sqrt(EMB_DIM / HEADS)
TILE = 128          # query/row tile: full MXU rows, keeps >=2 tiles for v7x megacore
NEG_INF = -1e30


def _resident_spec(block_shape):
    """Constant-index_map resident block: fetched once; single-buffered when
    `pipeline_mode` is available (halves its VMEM footprint)."""
    idx = lambda i, _n=len(block_shape): (0,) * _n
    try:
        return pl.BlockSpec(block_shape, idx, pipeline_mode=pl.Buffered(1))
    except TypeError:   # older jax without pipeline_mode kwarg
        return pl.BlockSpec(block_shape, idx)


def _vmem_limit_bytes():
    """~75% of physical VMEM, capped at 96 MiB (96 MiB on v5e/v6e, 48 MiB on v7x)."""
    try:
        cap = pltpu.get_tpu_info().vmem_capacity_bytes
    except Exception:
        cap = 128 * 1024 * 1024
    return int(min(96 * 1024 * 1024, (cap * 3) // 4))


def prepare_params(params):
    """One-time parameter prep (hoisted out of the per-call path).
    params use the PyTorch Linear layout: weights (out, in), biases (out,)."""
    E = EMB_DIM
    w_kv = jnp.concatenate([params["wk"].T, params["wv"].T], axis=1).astype(jnp.bfloat16)
    b_kv = jnp.concatenate([params["bk"], params["bv"]]).reshape(1, 2 * E).astype(jnp.float32)
    # fold the 1/sqrt(dim_head) score scale into the Q projection
    w_q = (params["wq"].T * SCALE).astype(jnp.bfloat16)
    b_q = (params["bq"] * SCALE).reshape(1, E).astype(jnp.float32)
    w_0 = params["w0"].T.astype(jnp.bfloat16)
    b_0 = params["b0"].reshape(1, E).astype(jnp.float32)
    return dict(w_kv=w_kv, b_kv=b_kv, w_q=w_q, b_q=b_q, w_0=w_0, b_0=b_0)


def attention_forward(x, prep, *, tile=TILE, interpret=False):
    """x: (S, 128) float32.  prep: output of prepare_params."""
    S, E = x.shape
    assert E == EMB_DIM
    n_tiles = int(pl.cdiv(S, tile))
    Sp = n_tiles * tile
    x_p = jnp.pad(x, ((0, Sp - S), (0, 0))) if Sp != S else x

    # additive key-padding bias: 0.0 for real keys, -1e30 for padded keys
    mask_bias = jnp.where(jnp.arange(Sp) < S, 0.0, NEG_INF).reshape(1, Sp).astype(jnp.float32)

    cparams = pltpu.CompilerParams(
        dimension_semantics=("parallel",),          # shard row tiles across TCs (v7x)
        vmem_limit_bytes=_vmem_limit_bytes(),
    )

    # ----------------- kernel 1: fused K|V projection slab -----------------
    def kv_kernel(x_ref, w_ref, b_ref, kv_ref):
        x_bf = x_ref[...].astype(jnp.bfloat16)
        kv = jnp.dot(x_bf, w_ref[...], preferred_element_type=jnp.float32) + b_ref[...]
        kv_ref[...] = kv.astype(jnp.bfloat16)       # one lane-dense 256-wide store

    kv_cost = pl.CostEstimate(
        flops=2 * Sp * E * 2 * E,
        transcendentals=0,
        bytes_accessed=Sp * E * 4 + E * 2 * E * 2 + 2 * E * 4 + Sp * 2 * E * 2,
    )

    kv = pl.pallas_call(
        kv_kernel,
        grid=(n_tiles,),
        in_specs=[
            pl.BlockSpec((tile, E), lambda i: (i, 0)),   # x row tile (pipelined)
            _resident_spec((E, 2 * E)),                  # fused K|V weight, resident
            _resident_spec((1, 2 * E)),                  # fused K|V bias,  resident
        ],
        out_specs=pl.BlockSpec((tile, 2 * E), lambda i: (i, 0)),
        out_shape=jax.ShapeDtypeStruct((Sp, 2 * E), jnp.bfloat16),
        compiler_params=cparams,
        cost_estimate=kv_cost,
        interpret=interpret,
    )(x_p, prep["w_kv"], prep["b_kv"])

    # --- kernel 2: Q projection + attention + output projection + residual ---
    def attn_kernel(x_ref, kv_ref, wq_ref, bq_ref, w0_ref, b0_ref, bias_ref, o_ref):
        x_f32 = x_ref[...]
        # Q projection fused here (scale pre-folded into wq/bq): no q HBM trip
        q = (jnp.dot(x_f32.astype(jnp.bfloat16), wq_ref[...],
                     preferred_element_type=jnp.float32) + bq_ref[...]).astype(jnp.bfloat16)
        k = kv_ref[:, 0:E]            # lane-aligned columns of the resident K|V slab
        v = kv_ref[:, E:2 * E]
        # scores: contract last dims of q and k (no materialized k.T), f32 accum
        z = jax.lax.dot_general(q, k, (((1,), (1,)), ((), ())),
                                preferred_element_type=jnp.float32)
        z = z + bias_ref[...]         # key-padding bias: single VPU add
        m = jnp.max(z, axis=-1, keepdims=True)
        p = jnp.exp(z - m)
        l = jnp.sum(p, axis=-1, keepdims=True)
        av = jnp.dot(p.astype(jnp.bfloat16), v, preferred_element_type=jnp.float32)
        av = av * (1.0 / l)           # exact f32 normalization, (tile,1) divide
        out = jnp.dot(av.astype(jnp.bfloat16), w0_ref[...],
                      preferred_element_type=jnp.float32) + b0_ref[...]
        o_ref[...] = out + x_f32      # residual add

    attn_cost = pl.CostEstimate(
        flops=4 * Sp * Sp * E + 4 * Sp * E * E,
        transcendentals=Sp * Sp,
        bytes_accessed=(Sp * E * 4 + Sp * 2 * E * 2 + 2 * E * E * 2
                        + 2 * E * 4 + Sp * 4 + Sp * E * 4),
    )

    out_p = pl.pallas_call(
        attn_kernel,
        grid=(n_tiles,),
        in_specs=[
            pl.BlockSpec((tile, E), lambda i: (i, 0)),   # x tile (q proj + residual)
            _resident_spec((Sp, 2 * E)),                 # K|V slab, VMEM-resident
            _resident_spec((E, E)),                      # w_q (pre-scaled)
            _resident_spec((1, E)),                      # b_q (pre-scaled)
            _resident_spec((E, E)),                      # w_0
            _resident_spec((1, E)),                      # b_0
            _resident_spec((1, Sp)),                     # key-padding additive bias
        ],
        out_specs=pl.BlockSpec((tile, E), lambda i: (i, 0)),
        out_shape=jax.ShapeDtypeStruct((Sp, E), jnp.float32),
        compiler_params=cparams,
        cost_estimate=attn_cost,
        interpret=interpret,
    )(x_p, kv, prep["w_q"], prep["b_q"], prep["w_0"], prep["b_0"], mask_bias)

    return out_p[:S]


def init_params(key):
    """Deterministic init mimicking nn.Linear's uniform(-1/sqrt(in), 1/sqrt(in))."""
    bound = 1.0 / sqrt(EMB_DIM)
    names = ["wq", "bq", "wk", "bk", "wv", "bv", "w0", "b0"]
    keys = jax.random.split(key, len(names))
    params = {}
    for name, k in zip(names, keys):
        shape = (EMB_DIM, EMB_DIM) if name.startswith("w") else (EMB_DIM,)
        params[name] = jax.random.uniform(k, shape, jnp.float32,
                                          minval=-bound, maxval=bound)
    return params


def reference_f32(x, p):
    """Straight f32 transcription of the PyTorch module."""
    q = x @ p["wq"].T + p["bq"]
    k = x @ p["wk"].T + p["bk"]
    v = x @ p["wv"].T + p["bv"]
    att = jax.nn.softmax((q @ k.T) * SCALE, axis=-1)
    return (att @ v) @ p["w0"].T + p["b0"] + x


def reference_matched(x, prep):
    """Same math with the kernel's precision policy: bf16 MXU inputs, f32
    accumulation, f32 softmax, scale folded into the Q projection."""
    E = EMB_DIM
    bf = jnp.bfloat16
    x_bf = x.astype(bf)
    kv = (jnp.dot(x_bf, prep["w_kv"], preferred_element_type=jnp.float32)
          + prep["b_kv"]).astype(bf)
    k, v = kv[:, 0:E], kv[:, E:2 * E]
    q = (jnp.dot(x_bf, prep["w_q"], preferred_element_type=jnp.float32)
         + prep["b_q"]).astype(bf)
    z = jax.lax.dot_general(q, k, (((1,), (1,)), ((), ())),
                            preferred_element_type=jnp.float32)
    m = z.max(-1, keepdims=True)
    p = jnp.exp(z - m)
    l = p.sum(-1, keepdims=True)
    av = jnp.dot(p.astype(bf), v, preferred_element_type=jnp.float32) * (1.0 / l)
    out = jnp.dot(av.astype(bf), prep["w_0"],
                  preferred_element_type=jnp.float32) + prep["b_0"]
    return out + x


if __name__ == "__main__":
    key = jax.random.PRNGKey(0)
    k_x1, k_x2, k_p = jax.random.split(key, 3)
    params = init_params(k_p)
    prep = prepare_params(params)   # one-time weight glue, outside the per-call path

    # S=8: padded single-tile case; S=200: multi-tile grid + key masking.
    for S, kx in ((8, k_x1), (200, k_x2)):
        x = jax.random.normal(kx, (S, EMB_DIM), jnp.float32)
        out = jax.block_until_ready(attention_forward(x, prep))
        assert out.shape == (S, EMB_DIM)

        ref_m = reference_matched(x, prep)   # same precision policy: tight check
        ref_f = reference_f32(x, params)     # full-f32 math: loose sanity check
        assert jnp.allclose(out, ref_m, atol=5e-3, rtol=5e-3), \
            f"S={S}: mismatch vs precision-matched reference"
        assert jnp.allclose(out, ref_f, atol=3e-2, rtol=3e-2), \
            f"S={S}: mismatch vs f32 reference"

    print("KERNEL_OK")
</pallas_src>

<mosaic_0001>
module attributes {stable_mosaic.version = 11 : i64} {
  func.func @kv_kernel(%arg0: i32, %arg1: memref<128x128xf32, #tpu.memory_space<vmem>>, %arg2: memref<128x256xbf16, #tpu.memory_space<vmem>>, %arg3: memref<1x256xf32, #tpu.memory_space<vmem>>, %arg4: memref<128x256xbf16, #tpu.memory_space<vmem>>) attributes {dimension_semantics = [#tpu.dimension_semantics<parallel>], iteration_bounds = array<i64: 1>, scalar_prefetch = 0 : i64, scratch_operands = 0 : i64, tpu.core_type = #tpu.core_type<tc>, window_params = [{transform_indices = @transform_0, window_bounds = array<i64: 128, 128>}, {pipeline_mode = #tpu.pipeline_mode<synchronous>, transform_indices = @transform_1, window_bounds = array<i64: 128, 256>}, {pipeline_mode = #tpu.pipeline_mode<synchronous>, transform_indices = @transform_2, window_bounds = array<i64: 1, 256>}, {transform_indices = @transform_3, window_bounds = array<i64: 128, 256>}]} {
    %c0 = arith.constant 0 : index
    %c0_0 = arith.constant 0 : index
    %0 = vector.load %arg1[%c0, %c0_0] : memref<128x128xf32, #tpu.memory_space<vmem>>, vector<128x128xf32>
    %1 = arith.truncf %0 : vector<128x128xf32> to vector<128x128xbf16>
    %c0_1 = arith.constant 0 : index
    %c0_2 = arith.constant 0 : index
    %2 = vector.load %arg2[%c0_1, %c0_2] : memref<128x256xbf16, #tpu.memory_space<vmem>>, vector<128x256xbf16>
    %cst = arith.constant dense<0.000000e+00> : vector<128x256xf32>
    %3 = tpu.matmul %1, %2, %cst {dimension_numbers = #tpu.dot_dimension_numbers<[1], [0], [0], [1], [0, 0, 1, 1], [], []>} : vector<128x128xbf16>, vector<128x256xbf16>, vector<128x256xf32> -> vector<128x256xf32>
    %c0_3 = arith.constant 0 : index
    %c0_4 = arith.constant 0 : index
    %4 = vector.load %arg3[%c0_3, %c0_4] : memref<1x256xf32, #tpu.memory_space<vmem>>, vector<1x256xf32>
    %5 = vector.broadcast %4 : vector<1x256xf32> to vector<128x256xf32>
    %6 = arith.addf %3, %5 : vector<128x256xf32>
    %7 = arith.truncf %6 : vector<128x256xf32> to vector<128x256xbf16>
    %c0_5 = arith.constant 0 : index
    %c0_6 = arith.constant 0 : index
    %8 = vector.load %arg4[%c0_5, %c0_6] : memref<128x256xbf16, #tpu.memory_space<vmem>>, vector<128x256xbf16>
    tpu.vector_store %arg4[%c0_5, %c0_6], %7 {strides = array<i32>} : memref<128x256xbf16, #tpu.memory_space<vmem>>, vector<128x256xbf16>,
    return
  }
  func.func @transform_0(%arg0: i32) -> (i32, i32) {
    %c0_i32 = arith.constant 0 : i32
    %c0_i32_0 = arith.constant 0 : i32
    return %arg0, %c0_i32 : i32, i32
  }
  func.func @transform_1(%arg0: i32) -> (i32, i32) {
    %c0_i32 = arith.constant 0 : i32
    %c0_i32_0 = arith.constant 0 : i32
    %c0_i32_1 = arith.constant 0 : i32
    return %c0_i32, %c0_i32_0 : i32, i32
  }
  func.func @transform_2(%arg0: i32) -> (i32, i32) {
    %c0_i32 = arith.constant 0 : i32
    %c0_i32_0 = arith.constant 0 : i32
    %c0_i32_1 = arith.constant 0 : i32
    return %c0_i32, %c0_i32_0 : i32, i32
  }
  func.func @transform_3(%arg0: i32) -> (i32, i32) {
    %c0_i32 = arith.constant 0 : i32
    %c0_i32_0 = arith.constant 0 : i32
    return %arg0, %c0_i32 : i32, i32
  }
}

</mosaic_0001>

<llo_original>
// kernel: tpu_custom_call.1
$region0: #{tpu_custom_call.1}
  #allocation0 [shape = 'u32[]', space=smem, size = 0x4, offset = 0x4, fixed_abs, tag = 'smem constant byte address 0x4 - core index']
  #allocation1 [shape = 'u32[144,128]{1,0:T(1,128)}', space=vmem, size = 0x12000, scoped, tag = 'internal scratch']
  %s0 = inlined_call_operand.hbm [shape: f32[128,128], index: 0, kind: input, shape index: {}]
  %s1 = inlined_call_operand.hbm [shape: bf16[128,256], index: 1, kind: input, shape index: {}]
  %s2 = inlined_call_operand.hbm [shape: f32[1,256], index: 2, kind: input, shape index: {}]
  %s3 = inlined_call_operand.hbm [shape: bf16[128,256], index: 3, kind: output, shape index: {}]
  %s4 = sld [smem:[#allocation0]]
  $region34: #{tpu_custom_call.1} parent=0
    _
  %s6 = ssub.s32 1, %s4
  %s7 = scalar_select 0, %s6, %s4
  $region1: #{tpu_custom_call.1} parent=0
    #allocation2 [shape = 'u8[65536]{0}', space=vmem, size = 0x10000, scoped, tag = 'input window, operand 0, single buffered']
    #allocation3 [shape = 's32[1]{0}', space=sflag, size = 0x4, scoped, tag = 'scoped memory for tpu_custom_call.1']
    #allocation4 [shape = 's32[1]{0}', space=sflag, size = 0x4, scoped, tag = 'scoped memory for tpu_custom_call.1']
    #allocation5 [shape = 'u8[65536]{0}', space=vmem, size = 0x10000, scoped, tag = 'input window, operand 1, single buffered']
    #allocation6 [shape = 's32[1]{0}', space=sflag, size = 0x4, scoped, tag = 'scoped memory for tpu_custom_call.1']
    #allocation7 [shape = 'u8[1024]{0}', space=vmem, size = 0x400, scoped, tag = 'input window, operand 2, single buffered']
    #allocation8 [shape = 'u8[65536]{0}', space=vmem, size = 0x10000, scoped, tag = 'output window, operand 0, single buffered']
    %8 = vsyncpa [#allocation3], 0
    %9 = vsyncpa [#allocation6], 0
    %10 = vsyncpa [#allocation4], 0
    // Predicated region
    $region2: #{tpu_custom_call.1} parent=1 // pred_check
      _
    $region3: #{tpu_custom_call.1} parent=1 // pred_check_branch
      %12 = sbr.rel (0) target = $region5
    $region4: #{tpu_custom_call.1} parent=1 // pred_region
      %s14 = ssub.s32 2048, 2048
      %15 = vsyncadd [#allocation3], %s14
      %s16 = sshll.u32 [#allocation2], 4
      %s17 = int_to_ptr.vmem [resolvable:$true] %s16
      %22 = dma.hbm_to_vmem [thread:$0]  %s0, 2048, %s17, [#allocation3], 128, 128, 8
    $region5: #{tpu_custom_call.1} parent=1 // pred_fallthru
      _
    // Predicated region
    $region6: #{tpu_custom_call.1} parent=1 // pred_check
      _
    $region7: #{tpu_custom_call.1} parent=1 // pred_check_branch
      %24 = sbr.rel (0) target = $region9
    $region8: #{tpu_custom_call.1} parent=1 // pred_region
      %s26 = ssub.s32 2048, 2048
      %27 = vsyncadd [#allocation6], %s26
      %s28 = sshll.u32 [#allocation5], 4
      %s29 = int_to_ptr.vmem [resolvable:$true] %s28
      %34 = dma.hbm_to_vmem [thread:$0]  %s1, 2048, %s29, [#allocation6], 128, 128, 8
    $region9: #{tpu_custom_call.1} parent=1 // pred_fallthru
      _
    // Predicated region
    $region10: #{tpu_custom_call.1} parent=1 // pred_check
      _
    $region11: #{tpu_custom_call.1} parent=1 // pred_check_branch
      %36 = sbr.rel (0) target = $region13
    $region12: #{tpu_custom_call.1} parent=1 // pred_region
      %s38 = ssub.s32 32, 32
      %39 = vsyncadd [#allocation6], %s38
      %s41 = sshll.u32 [#allocation7], 4
      %s42 = int_to_ptr.vmem [resolvable:$true] %s41
      %44 = dma.hbm_to_vmem [thread:$0]  %s2, 32, %s42, [#allocation6]
    $region13: #{tpu_custom_call.1} parent=1 // pred_fallthru
      _
    // Predicated region
    $region14: #{tpu_custom_call.1} parent=1 // pred_check
      _
    $region15: #{tpu_custom_call.1} parent=1 // pred_check_branch
      %46 = sbr.rel (0) target = $region17
    $region16: #{tpu_custom_call.1} parent=1 // pred_region
      %47 = dma.done [#allocation3], 2048
    $region17: #{tpu_custom_call.1} parent=1 // pred_fallthru
      _
    // Predicated region
    $region18: #{tpu_custom_call.1} parent=1 // pred_check
      _
    $region19: #{tpu_custom_call.1} parent=1 // pred_check_branch
      %49 = sbr.rel (0) target = $region21
    $region20: #{tpu_custom_call.1} parent=1 // pred_region
      %50 = dma.done [#allocation6], 2048
    $region21: #{tpu_custom_call.1} parent=1 // pred_fallthru
      _
    // Predicated region
    $region22: #{tpu_custom_call.1} parent=1 // pred_check
      _
    $region23: #{tpu_custom_call.1} parent=1 // pred_check_branch
      %52 = sbr.rel (0) target = $region25
    $region24: #{tpu_custom_call.1} parent=1 // pred_region
      %53 = dma.done [#allocation6], 32
    $region25: #{tpu_custom_call.1} parent=1 // pred_fallthru
      _
    %v55 = vld [vmem:[#allocation2] sm:$0xff]
    %v56 = vld [vmem:[#allocation2 + $0x8] sm:$0xff]
    %v57 = vld [vmem:[#allocation2 + $0x10] sm:$0xff]
    %v58 = vld [vmem:[#allocation2 + $0x18] sm:$0xff]
    %v59 = vld [vmem:[#allocation2 + $0x20] sm:$0xff]
    %v60 = vld [vmem:[#allocation2 + $0x28] sm:$0xff]
    %v61 = vld [vmem:[#allocation2 + $0x30] sm:$0xff]
    %v62 = vld [vmem:[#allocation2 + $0x38] sm:$0xff]
    %v63 = vld [vmem:[#allocation2 + $0x40] sm:$0xff]
    %v64 = vld [vmem:[#allocation2 + $0x48] sm:$0xff]
    %v65 = vld [vmem:[#allocation2 + $0x50] sm:$0xff]
    %v66 = vld [vmem:[#allocation2 + $0x58] sm:$0xff]
    %v67 = vld [vmem:[#allocation2 + $0x60] sm:$0xff]
    %v68 = vld [vmem:[#allocation2 + $0x68] sm:$0xff]
    %v69 = vld [vmem:[#allocation2 + $0x70] sm:$0xff]
    %v70 = vld [vmem:[#allocation2 + $0x78] sm:$0xff]
    %v71 = vpack.c.bf16 %v56, %v55
    %v72 = vpack.c.bf16 %v58, %v57
    %v73 = vpack.c.bf16 %v60, %v59
    %v74 = vpack.c.bf16 %v62, %v61
    %v75 = vpack.c.bf16 %v64, %v63
    %v76 = vpack.c.bf16 %v66, %v65
    %v77 = vpack.c.bf16 %v68, %v67
    %v78 = vpack.c.bf16 %v70, %v69
    %v79 = vld [vmem:[#allocation5] sm:$0xff]
    %v80 = vld [vmem:[#allocation5 + $0x8] sm:$0xff]
    %v81 = vld [vmem:[#allocation5 + $0x10] sm:$0xff]
    %v82 = vld [vmem:[#allocation5 + $0x18] sm:$0xff]
    %v83 = vld [vmem:[#allocation5 + $0x20] sm:$0xff]
    %v84 = vld [vmem:[#allocation5 + $0x28] sm:$0xff]
    %v85 = vld [vmem:[#allocation5 + $0x30] sm:$0xff]
    %v86 = vld [vmem:[#allocation5 + $0x38] sm:$0xff]
    %v87 = vld [vmem:[#allocation5 + $0x40] sm:$0xff]
    %v88 = vld [vmem:[#allocation5 + $0x48] sm:$0xff]
    %v89 = vld [vmem:[#allocation5 + $0x50] sm:$0xff]
    %v90 = vld [vmem:[#allocation5 + $0x58] sm:$0xff]
    %v91 = vld [vmem:[#allocation5 + $0x60] sm:$0xff]
    %v92 = vld [vmem:[#allocation5 + $0x68] sm:$0xff]
    %v93 = vld [vmem:[#allocation5 + $0x70] sm:$0xff]
    %v94 = vld [vmem:[#allocation5 + $0x78] sm:$0xff]
    %v95 = vld [vmem:[#allocation7] sm:$0x3]
    %v97 = vlaneseq
    %v98 = vshrl.u32 %v97, 7
    %v99 = vsub.s32 0, %v98
    %v100 = vrot.slane %v95, %v99
    %v101 = vlaneseq
    %v102 = vshrl.u32 %v101, 7
    %v103 = vsub.s32 1, %v102
    %v104 = vrot.slane %v95, %v103
    %v123 = vunpack.c.l.b16 %v79
    %v124 = vunpack.c.h.b16 %v79
    %v125 = vunpack.c.l.b16 %v80
    %v126 = vunpack.c.h.b16 %v80
    %v127 = vunpack.c.l.b16 %v81
    %v128 = vunpack.c.h.b16 %v81
    %v129 = vunpack.c.l.b16 %v82
    %v130 = vunpack.c.h.b16 %v82
    %v131 = vunpack.c.l.b16 %v83
    %v132 = vunpack.c.h.b16 %v83
    %v133 = vunpack.c.l.b16 %v84
    %v134 = vunpack.c.h.b16 %v84
    %v135 = vunpack.c.l.b16 %v85
    %v136 = vunpack.c.h.b16 %v85
    %v137 = vunpack.c.l.b16 %v86
    %v138 = vunpack.c.h.b16 %v86
    %v139 = vunpack.c.l.b16 %v87
    %v140 = vunpack.c.h.b16 %v87
    %v141 = vunpack.c.l.b16 %v88
    %v142 = vunpack.c.h.b16 %v88
    %v143 = vunpack.c.l.b16 %v89
    %v144 = vunpack.c.h.b16 %v89
    %v145 = vunpack.c.l.b16 %v90
    %v146 = vunpack.c.h.b16 %v90
    %v147 = vunpack.c.l.b16 %v91
    %v148 = vunpack.c.h.b16 %v91
    %v149 = vunpack.c.l.b16 %v92
    %v150 = vunpack.c.h.b16 %v92
    %v151 = vunpack.c.l.b16 %v93
    %v152 = vunpack.c.h.b16 %v93
    %v153 = vunpack.c.l.b16 %v94
    %v154 = vunpack.c.h.b16 %v94
    %v155 = vpack.c.b16 %v125, %v123
    %v156 = vpack.c.b16 %v126, %v124
    %v157 = vpack.c.b16 %v129, %v127
    %v158 = vpack.c.b16 %v130, %v128
    %v159 = vpack.c.b16 %v133, %v131
    %v160 = vpack.c.b16 %v134, %v132
    %v161 = vpack.c.b16 %v137, %v135
    %v162 = vpack.c.b16 %v138, %v136
    %v163 = vpack.c.b16 %v141, %v139
    %v164 = vpack.c.b16 %v142, %v140
    %v165 = vpack.c.b16 %v145, %v143
    %v166 = vpack.c.b16 %v146, %v144
    %v167 = vpack.c.b16 %v149, %v147
    %v168 = vpack.c.b16 %v150, %v148
    %v169 = vpack.c.b16 %v153, %v151
    %v170 = vpack.c.b16 %v154, %v152
    %187 = vmatprep.subr.bf16.mxu0 %v156
    %188 = vmatpush1.bf16.msra.mxu0 %v155
    %189 = vmatprep.subr.bf16.mxu0 %v158
    %190 = vmatpush1.bf16.msra.mxu0 %v157
    %191 = vmatprep.subr.bf16.mxu0 %v160
    %192 = vmatpush1.bf16.msra.mxu0 %v159
    %193 = vmatprep.subr.bf16.mxu0 %v162
    %194 = vmatpush1.bf16.msra.mxu0 %v161
    %195 = vmatprep.subr.bf16.mxu0 %v164
    %196 = vmatpush1.bf16.msra.mxu0 %v163
    %197 = vmatprep.subr.bf16.mxu0 %v166
    %198 = vmatpush1.bf16.msra.mxu0 %v165
    %199 = vmatprep.subr.bf16.mxu0 %v168
    %200 = vmatpush1.bf16.msra.mxu0 %v167
    %201 = vmatprep.subr.bf16.mxu0 %v170
    %202 = vmatpush1.bf16.msra.mxu0 %v169
    %203 = vmatprep.subr.bf16.mxu0 0
    %204 = vmatpush1.bf16.msra.mxu0 0
    %205 = vmatprep.subr.bf16.mxu0 0
    %206 = vmatpush1.bf16.msra.mxu0 0
    %207 = vmatprep.subr.bf16.mxu0 0
    %208 = vmatpush1.bf16.msra.mxu0 0
    %209 = vmatprep.subr.bf16.mxu0 0
    %210 = vmatpush1.bf16.msra.mxu0 0
    %211 = vmatprep.subr.bf16.mxu0 0
    %212 = vmatpush1.bf16.msra.mxu0 0
    %213 = vmatprep.subr.bf16.mxu0 0
    %214 = vmatpush1.bf16.msra.mxu0 0
    %215 = vmatprep.subr.bf16.mxu0 0
    %216 = vmatpush1.bf16.msra.mxu0 0
    %217 = vmatprep.subr.bf16.mxu0 0
    %218 = vmatpush1.bf16.msra.mxu0 0
    %219 = vmatprep.mubr.bf16.mxu0 0
    %220 = vmatmul.mubr.bf16.gmra.mrb[0].mxu0 %v71
    %v221 = vpop.f32.mrb[0].mxu0
    %v222 = vadd.f32 %v100, %v221
    %v223 = vpop.f32.mrb[0].mxu0
    %v224 = vadd.f32 %v104, %v223
    %v225 = vpop.f32.mrb[0].mxu0
    %v226 = vadd.f32 %v100, %v225
    %v227 = vpop.f32.mrb[0].mxu0
    %v228 = vadd.f32 %v104, %v227
    %229 = vmatprep.mubr.bf16.mxu0 0
    %230 = vmatmul.mubr.bf16.gmra.mrb[0].mxu0 %v72
    %v231 = vpop.f32.mrb[0].mxu0
    %v232 = vadd.f32 %v100, %v231
    %v233 = vpop.f32.mrb[0].mxu0
    %v234 = vadd.f32 %v104, %v233
    %v235 = vpop.f32.mrb[0].mxu0
    %v236 = vadd.f32 %v100, %v235
    %v237 = vpop.f32.mrb[0].mxu0
    %v238 = vadd.f32 %v104, %v237
    %239 = vmatprep.mubr.bf16.mxu0 0
    %240 = vmatmul.mubr.bf16.gmra.mrb[0].mxu0 %v73
    %v241 = vpop.f32.mrb[0].mxu0
    %v242 = vadd.f32 %v100, %v241
    %v243 = vpop.f32.mrb[0].mxu0
    %v244 = vadd.f32 %v104, %v243
    %v245 = vpop.f32.mrb[0].mxu0
    %v246 = vadd.f32 %v100, %v245
    %v247 = vpop.f32.mrb[0].mxu0
    %v248 = vadd.f32 %v104, %v247
    %249 = vmatprep.mubr.bf16.mxu0 0
    %250 = vmatmul.mubr.bf16.gmra.mrb[0].mxu0 %v74
    %v251 = vpop.f32.mrb[0].mxu0
    %v252 = vadd.f32 %v100, %v251
    %v253 = vpop.f32.mrb[0].mxu0
    %v254 = vadd.f32 %v104, %v253
    %v255 = vpop.f32.mrb[0].mxu0
    %v256 = vadd.f32 %v100, %v255
    %v257 = vpop.f32.mrb[0].mxu0
    %v258 = vadd.f32 %v104, %v257
    %259 = vmatprep.mubr.bf16.mxu0 0
    %260 = vmatmul.mubr.bf16.gmra.mrb[0].mxu0 %v75
    %v261 = vpop.f32.mrb[0].mxu0
    %v262 = vadd.f32 %v100, %v261
    %v263 = vpop.f32.mrb[0].mxu0
    %v264 = vadd.f32 %v104, %v263
    %v265 = vpop.f32.mrb[0].mxu0
    %v266 = vadd.f32 %v100, %v265
    %v267 = vpop.f32.mrb[0].mxu0
    %v268 = vadd.f32 %v104, %v267
    %269 = vmatprep.mubr.bf16.mxu0 0
    %270 = vmatmul.mubr.bf16.gmra.mrb[0].mxu0 %v76
    %v271 = vpop.f32.mrb[0].mxu0
    %v272 = vadd.f32 %v100, %v271
    %v273 = vpop.f32.mrb[0].mxu0
    %v274 = vadd.f32 %v104, %v273
    %v275 = vpop.f32.mrb[0].mxu0
    %v276 = vadd.f32 %v100, %v275
    %v277 = vpop.f32.mrb[0].mxu0
    %v278 = vadd.f32 %v104, %v277
    %279 = vmatprep.mubr.bf16.mxu0 0
    %280 = vmatmul.mubr.bf16.gmra.mrb[0].mxu0 %v77
    %v281 = vpop.f32.mrb[0].mxu0
    %v282 = vadd.f32 %v100, %v281
    %v283 = vpop.f32.mrb[0].mxu0
    %v284 = vadd.f32 %v104, %v283
    %v285 = vpop.f32.mrb[0].mxu0
    %v286 = vadd.f32 %v100, %v285
    %v287 = vpop.f32.mrb[0].mxu0
    %v288 = vadd.f32 %v104, %v287
    %289 = vmatprep.mubr.bf16.mxu0 0
    %290 = vmatmul.mubr.bf16.gmra.mrb[0].mxu0 %v78
    %v291 = vpop.f32.mrb[0].mxu0
    %v292 = vadd.f32 %v100, %v291
    %v293 = vpop.f32.mrb[0].mxu0
    %v294 = vadd.f32 %v104, %v293
    %v295 = vpop.f32.mrb[0].mxu0
    %v296 = vadd.f32 %v100, %v295
    %v297 = vpop.f32.mrb[0].mxu0
    %v298 = vadd.f32 %v104, %v297
    %299 = vdwg.mxu0
    %v300 = vpack.c.bf16 %v226, %v222
    %v301 = vpack.c.bf16 %v228, %v224
    %v302 = vpack.c.bf16 %v236, %v232
    %v303 = vpack.c.bf16 %v238, %v234
    %v304 = vpack.c.bf16 %v246, %v242
    %v305 = vpack.c.bf16 %v248, %v244
    %v306 = vpack.c.bf16 %v256, %v252
    %v307 = vpack.c.bf16 %v258, %v254
    %v308 = vpack.c.bf16 %v266, %v262
    %v309 = vpack.c.bf16 %v268, %v264
    %v310 = vpack.c.bf16 %v276, %v272
    %v311 = vpack.c.bf16 %v278, %v274
    %v312 = vpack.c.bf16 %v286, %v282
    %v313 = vpack.c.bf16 %v288, %v284
    %v314 = vpack.c.bf16 %v296, %v292
    %v315 = vpack.c.bf16 %v298, %v294
    %v332 = vunpack.c.l.b16 %v300
    %v333 = vunpack.c.l.b16 %v301
    %v334 = vunpack.c.h.b16 %v300
    %v335 = vunpack.c.h.b16 %v301
    %v336 = vunpack.c.l.b16 %v302
    %v337 = vunpack.c.l.b16 %v303
    %v338 = vunpack.c.h.b16 %v302
    %v339 = vunpack.c.h.b16 %v303
    %v340 = vunpack.c.l.b16 %v304
    %v341 = vunpack.c.l.b16 %v305
    %v342 = vunpack.c.h.b16 %v304
    %v343 = vunpack.c.h.b16 %v305
    %v344 = vunpack.c.l.b16 %v306
    %v345 = vunpack.c.l.b16 %v307
    %v346 = vunpack.c.h.b16 %v306
    %v347 = vunpack.c.h.b16 %v307
    %v348 = vunpack.c.l.b16 %v308
    %v349 = vunpack.c.l.b16 %v309
    %v350 = vunpack.c.h.b16 %v308
    %v351 = vunpack.c.h.b16 %v309
    %v352 = vunpack.c.l.b16 %v310
    %v353 = vunpack.c.l.b16 %v311
    %v354 = vunpack.c.h.b16 %v310
    %v355 = vunpack.c.h.b16 %v311
    %v356 = vunpack.c.l.b16 %v312
    %v357 = vunpack.c.l.b16 %v313
    %v358 = vunpack.c.h.b16 %v312
    %v359 = vunpack.c.h.b16 %v313
    %v360 = vunpack.c.l.b16 %v314
    %v361 = vunpack.c.l.b16 %v315
    %v362 = vunpack.c.h.b16 %v314
    %v363 = vunpack.c.h.b16 %v315
    %v364 = vpack.c.b16 %v333, %v332
    %v365 = vpack.c.b16 %v335, %v334
    %v366 = vpack.c.b16 %v337, %v336
    %v367 = vpack.c.b16 %v339, %v338
    %v368 = vpack.c.b16 %v341, %v340
    %v369 = vpack.c.b16 %v343, %v342
    %v370 = vpack.c.b16 %v345, %v344
    %v371 = vpack.c.b16 %v347, %v346
    %v372 = vpack.c.b16 %v349, %v348
    %v373 = vpack.c.b16 %v351, %v350
    %v374 = vpack.c.b16 %v353, %v352
    %v375 = vpack.c.b16 %v355, %v354
    %v376 = vpack.c.b16 %v357, %v356
    %v377 = vpack.c.b16 %v359, %v358
    %v378 = vpack.c.b16 %v361, %v360
    %v379 = vpack.c.b16 %v363, %v362
    %396 = vst [vmem:[#allocation8] sm:$0xff] %v364
    %397 = vst [vmem:[#allocation8 + $0x8] sm:$0xff] %v365
    %398 = vst [vmem:[#allocation8 + $0x10] sm:$0xff] %v366
    %399 = vst [vmem:[#allocation8 + $0x18] sm:$0xff] %v367
    %400 = vst [vmem:[#allocation8 + $0x20] sm:$0xff] %v368
    %401 = vst [vmem:[#allocation8 + $0x28] sm:$0xff] %v369
    %402 = vst [vmem:[#allocation8 + $0x30] sm:$0xff] %v370
    %403 = vst [vmem:[#allocation8 + $0x38] sm:$0xff] %v371
    %404 = vst [vmem:[#allocation8 + $0x40] sm:$0xff] %v372
    %405 = vst [vmem:[#allocation8 + $0x48] sm:$0xff] %v373
    %406 = vst [vmem:[#allocation8 + $0x50] sm:$0xff] %v374
    %407 = vst [vmem:[#allocation8 + $0x58] sm:$0xff] %v375
    %408 = vst [vmem:[#allocation8 + $0x60] sm:$0xff] %v376
    %409 = vst [vmem:[#allocation8 + $0x68] sm:$0xff] %v377
    %410 = vst [vmem:[#allocation8 + $0x70] sm:$0xff] %v378
    %411 = vst [vmem:[#allocation8 + $0x78] sm:$0xff] %v379
    // Predicated region
    $region26: #{tpu_custom_call.1} parent=1 // pred_check
      _
    $region27: #{tpu_custom_call.1} parent=1 // pred_check_branch
      %413 = sbr.rel (0) target = $region29
    $region28: #{tpu_custom_call.1} parent=1 // pred_region
      %s415 = ssub.s32 2048, 2048
      %416 = vsyncadd [#allocation4], %s415
      %s417 = sshll.u32 [#allocation8], 4
      %s418 = int_to_ptr.vmem [resolvable:$true] %s417
      %423 = dma.vmem_to_hbm [thread:$0]  %s418, 2048, %s3, [#allocation4], 128, 128, 8
    $region29: #{tpu_custom_call.1} parent=1 // pred_fallthru
      _
    // Predicated region
    $region30: #{tpu_custom_call.1} parent=1 // pred_check
      _
    $region31: #{tpu_custom_call.1} parent=1 // pred_check_branch
      %425 = sbr.rel (0) target = $region33
    $region32: #{tpu_custom_call.1} parent=1 // pred_region
      %426 = dma.done [#allocation4], 2048
    $region33: #{tpu_custom_call.1} parent=1 // pred_fallthru
      _
    %427 = vsyncpa [#allocation3], 1
    %428 = vsyncpa [#allocation6], 1
    %429 = vsyncpa [#allocation4], 1

</llo_original>
